<compile_context>
chip_gen: v7x
topology: tpu7x:2x2x1
jax: 0.10.0
libtpu: 0.0.40
codegen_flags: <defaults>
</compile_context>

<pallas_src>
import functools

import jax
import jax.numpy as jnp
from jax import lax
from jax.experimental import pallas as pl
from jax.experimental.pallas import tpu as pltpu


def _round_up(x, m):
    return ((x + m - 1) // m) * m


# ----------------------------- Pallas kernel ------------------------------ #
def _patch_embed_kernel(p_ref, w_ref, params_ref, o_ref, *, eps, e_real):
    """One row-tile of: patches @ W + bias -> LayerNorm over E.

    p_ref:      (TM, CKKp)  bf16 patch tile (reduction axis zero-padded)
    w_ref:      (CKKp, Ep)  bf16 projection weight (zero-padded both axes)
    params_ref: (8, Ep)     f32; row 0 = conv bias, 1 = LN gamma, 2 = LN beta
    o_ref:      (TM, Ep)    bf16 (padded columns written as 0, sliced outside)
    """
    # MXU: bf16 x bf16 -> f32 accumulation.
    acc = jnp.dot(p_ref[...], w_ref[...], preferred_element_type=jnp.float32)
    acc = acc + params_ref[0:1, :]            # conv bias (0 in padded columns)

    # LayerNorm over the *real* E columns, one-pass statistics in f32.
    # Padded columns of acc are exactly zero (zero weight columns + zero
    # bias), so the plain sums over Ep already equal the sums over E.
    inv_e = 1.0 / e_real
    mean = jnp.sum(acc, axis=-1, keepdims=True) * inv_e
    var = jnp.sum(acc * acc, axis=-1, keepdims=True) * inv_e - mean * mean
    var = jnp.maximum(var, 0.0)               # guard E[x^2]-mean^2 cancellation
    normed = (acc - mean) * lax.rsqrt(var + eps)
    # Padded columns: gamma == beta == 0 there -> output 0 (sliced off anyway).
    o_ref[...] = (normed * params_ref[1:2, :] + params_ref[2:3, :]).astype(o_ref.dtype)


# ------------------------------ Wrapper ----------------------------------- #
def _im2col_nhwc(x_nhwc, kernel_size, stride):
    """Unfold NHWC input into (B*Ho*Wo, K*K*C), reduction order (ki, kj, c).

    The stack already emits the patch matrix in its final layout, so the
    K^2-inflated tensor is written to HBM once (no transpose pass over it).
    """
    B, H, W, C = x_nhwc.shape
    K = kernel_size
    pad = K // 2
    Ho = (H + 2 * pad - K) // stride + 1
    Wo = (W + 2 * pad - K) // stride + 1
    xp = jnp.pad(x_nhwc, ((0, 0), (pad, pad), (pad, pad), (0, 0)))

    cols = []
    for ki in range(K):
        for kj in range(K):
            cols.append(xp[:, ki: ki + stride * Ho: stride,
                            kj: kj + stride * Wo: stride, :])    # (B, Ho, Wo, C)
    patches = jnp.stack(cols, axis=3)                            # (B, Ho, Wo, K*K, C)
    patches = patches.reshape(B * Ho * Wo, K * K * C)            # r = (ki*K+kj)*C + c
    return patches, Ho, Wo


def _vmem_bytes(tm, ckkp, ep):
    return (2 * tm * ckkp * 2        # patch tile  (bf16, double-buffered)
            + 2 * ckkp * ep * 2      # weight      (bf16, grid-invariant, 2 bufs)
            + 2 * 8 * ep * 4         # fused params (f32)
            + 2 * tm * ep * 2)       # output tile (bf16, double-buffered)


def overlap_patch_embeddings(x, conv_w, conv_b, ln_gamma, ln_beta,
                             *, patch_size, stride, eps=1e-5, tile_m=512,
                             out_dtype=jnp.bfloat16):
    """x: (B, C, H, W).  conv_w: (E, C, K, K).  Returns (B, H'*W', E), H', W'."""
    B, C, H, W = x.shape
    E = conv_w.shape[0]
    K = patch_size

    # bf16 BEFORE the K^2 inflation: the patch matrix is built in bf16.
    x_nhwc = jnp.transpose(x, (0, 2, 3, 1)).astype(jnp.bfloat16)
    patches, Hout, Wout = _im2col_nhwc(x_nhwc, K, stride)        # (M, CKK) bf16
    M, CKK = patches.shape

    # Lane alignment: embedding axis -> x128 so the output store is lane-dense;
    # reduction axis -> x128 (not 256: padding it costs real HBM bytes while the
    # kernel is HBM-bound, and the MXU handles the ragged tail).
    CKKp = _round_up(CKK, 128)
    Ep = _round_up(E, 128)

    # Row tiling: big tiles amortize per-grid-step overhead (measured v6e:
    # 256 -> 63% of HBM roofline, 512 -> 85%, 1024 -> 86%).  Clamp for tiny
    # inputs, stay inside a conservative VMEM budget (v5e scoped default is
    # 16 MiB, v7x physical is 64 MiB), and keep >= 2 grid steps so both v7x
    # TensorCores get work along the "parallel" grid axis.
    tile_m = max(16, _round_up(min(tile_m, _round_up(M, 16)), 16))
    while tile_m > 64 and _vmem_bytes(tile_m, CKKp, Ep) > (24 << 20):
        tile_m = _round_up(tile_m // 2, 16)
    if M > 16 and _round_up(M, tile_m) // tile_m < 2:
        tile_m = max(16, _round_up((M + 1) // 2, 16))
    Mp = _round_up(M, tile_m)
    vmem_limit = int(min(64 << 20,
                         max(32 << 20, _vmem_bytes(tile_m, CKKp, Ep) + (8 << 20))))

    # Zero-pad (in bf16).  Padded rows only see the bias through LN -> finite
    # values -> sliced off below.  Padded reduction columns are numerically free.
    patches = jnp.pad(patches, ((0, Mp - M), (0, CKKp - CKK)))

    # Projection weight permuted to the (ki, kj, c) reduction order (tiny op).
    w2d = conv_w.astype(jnp.float32).transpose(2, 3, 1, 0).reshape(K * K * C, E)
    w2d = jnp.pad(w2d, ((0, CKKp - CKK), (0, Ep - E))).astype(jnp.bfloat16)

    # Fused per-channel parameters: bias / gamma / beta (one DMA).
    params = jnp.zeros((8, Ep), jnp.float32)
    params = params.at[0, :E].set(conv_b.astype(jnp.float32))
    params = params.at[1, :E].set(ln_gamma.astype(jnp.float32))
    params = params.at[2, :E].set(ln_beta.astype(jnp.float32))

    grid = (Mp // tile_m,)
    cost = pl.CostEstimate(
        flops=2 * Mp * CKKp * Ep + 8 * Mp * Ep,
        transcendentals=Mp,
        bytes_accessed=Mp * CKKp * 2 + CKKp * Ep * 2 + 8 * Ep * 4 + Mp * Ep * 2,
    )

    out = pl.pallas_call(
        functools.partial(_patch_embed_kernel, eps=eps, e_real=float(E)),
        out_shape=jax.ShapeDtypeStruct((Mp, Ep), out_dtype),
        grid_spec=pltpu.PrefetchScalarGridSpec(
            num_scalar_prefetch=0,
            grid=grid,
            in_specs=[
                pl.BlockSpec((tile_m, CKKp), lambda i: (i, 0)),   # patch tile
                pl.BlockSpec((CKKp, Ep), lambda i: (0, 0)),       # full weight
                pl.BlockSpec((8, Ep), lambda i: (0, 0)),          # fused params
            ],
            out_specs=pl.BlockSpec((tile_m, Ep), lambda i: (i, 0)),
        ),
        compiler_params=pltpu.CompilerParams(
            dimension_semantics=("parallel",),
            vmem_limit_bytes=vmem_limit),
        cost_estimate=cost,
    )(patches, w2d, params)

    out = out[:M, :E].reshape(B, Hout * Wout, E)
    return out, Hout, Wout


# --------------------------- Pure-JAX reference ---------------------------- #
def reference(x, conv_w, conv_b, ln_gamma, ln_beta, *, patch_size, stride, eps=1e-5):
    pad = patch_size // 2
    y = lax.conv_general_dilated(
        x, conv_w, window_strides=(stride, stride),
        padding=((pad, pad), (pad, pad)),
        dimension_numbers=("NCHW", "OIHW", "NCHW"),
        precision=lax.Precision.HIGHEST)
    y = y + conv_b.reshape(1, -1, 1, 1)
    B, E, Ho, Wo = y.shape
    y = y.reshape(B, E, Ho * Wo).transpose(0, 2, 1)             # (B, N, E)
    mean = jnp.mean(y, axis=-1, keepdims=True)
    var = jnp.mean((y - mean) ** 2, axis=-1, keepdims=True)
    y = (y - mean) * lax.rsqrt(var + eps)
    y = y * ln_gamma.reshape(1, 1, -1) + ln_beta.reshape(1, 1, -1)
    return y, Ho, Wo


# --------------------------------- Main ------------------------------------ #
if __name__ == "__main__":
    B, C, H, W = 2, 4, 16, 16
    patch_size = 7
    stride = 4
    embedding_dim = 32

    key = jax.random.PRNGKey(0)
    kx, kw, kb, kg, kbeta = jax.random.split(key, 5)

    x = jax.random.normal(kx, (B, C, H, W), dtype=jnp.float32)
    conv_w = (jax.random.normal(kw, (embedding_dim, C, patch_size, patch_size),
                                dtype=jnp.float32) * 0.05)
    conv_b = jax.random.normal(kb, (embedding_dim,), dtype=jnp.float32) * 0.05
    ln_gamma = 1.0 + 0.1 * jax.random.normal(kg, (embedding_dim,), dtype=jnp.float32)
    ln_beta = 0.1 * jax.random.normal(kbeta, (embedding_dim,), dtype=jnp.float32)

    out, Hout, Wout = overlap_patch_embeddings(
        x, conv_w, conv_b, ln_gamma, ln_beta,
        patch_size=patch_size, stride=stride)
    out = jax.block_until_ready(out)

    # Reference on bf16-quantized operands (kernel matmul is bf16 with f32
    # accumulation); the kernel additionally stores its output in bf16, so the
    # tolerance covers one bf16 rounding of the LN output.
    x_q = x.astype(jnp.bfloat16).astype(jnp.float32)
    w_q = conv_w.astype(jnp.bfloat16).astype(jnp.float32)
    ref, Hr, Wr = reference(
        x_q, w_q, conv_b, ln_gamma, ln_beta,
        patch_size=patch_size, stride=stride)

    assert (Hout, Wout) == (Hr, Wr), (Hout, Wout, Hr, Wr)
    assert out.shape == (B, Hout * Wout, embedding_dim), out.shape
    out_f32 = out.astype(jnp.float32)
    max_err = float(jnp.max(jnp.abs(out_f32 - ref)))
    assert jnp.allclose(out_f32, ref, atol=3e-2, rtol=2e-2), max_err

    print("KERNEL_OK")
</pallas_src>

<mosaic_0001>
module attributes {stable_mosaic.version = 11 : i64} {
  func.func @_patch_embed_kernel(%arg0: i32, %arg1: memref<16x256xbf16, #tpu.memory_space<vmem>>, %arg2: memref<256x128xbf16, #tpu.memory_space<vmem>>, %arg3: memref<8x128xf32, #tpu.memory_space<vmem>>, %arg4: memref<16x128xbf16, #tpu.memory_space<vmem>>) attributes {dimension_semantics = [#tpu.dimension_semantics<parallel>], iteration_bounds = array<i64: 2>, scalar_prefetch = 0 : i64, scratch_operands = 0 : i64, tpu.core_type = #tpu.core_type<tc>, window_params = [{transform_indices = @transform_0, window_bounds = array<i64: 16, 256>}, {pipeline_mode = #tpu.pipeline_mode<synchronous>, transform_indices = @transform_1, window_bounds = array<i64: 256, 128>}, {pipeline_mode = #tpu.pipeline_mode<synchronous>, transform_indices = @transform_2, window_bounds = array<i64: 8, 128>}, {transform_indices = @transform_3, window_bounds = array<i64: 16, 128>}]} {
    %c0 = arith.constant 0 : index
    %c0_0 = arith.constant 0 : index
    %0 = vector.load %arg1[%c0, %c0_0] : memref<16x256xbf16, #tpu.memory_space<vmem>>, vector<16x256xbf16>
    %c0_1 = arith.constant 0 : index
    %c0_2 = arith.constant 0 : index
    %1 = vector.load %arg2[%c0_1, %c0_2] : memref<256x128xbf16, #tpu.memory_space<vmem>>, vector<256x128xbf16>
    %cst = arith.constant dense<0.000000e+00> : vector<16x128xf32>
    %2 = tpu.matmul %0, %1, %cst {dimension_numbers = #tpu.dot_dimension_numbers<[1], [0], [0], [1], [0, 0, 1, 1], [], []>} : vector<16x256xbf16>, vector<256x128xbf16>, vector<16x128xf32> -> vector<16x128xf32>
    %c0_3 = arith.constant 0 : index
    %c0_4 = arith.constant 0 : index
    %3 = vector.load %arg3[%c0_3, %c0_4] : memref<8x128xf32, #tpu.memory_space<vmem>>, vector<1x128xf32>
    %4 = vector.broadcast %3 : vector<1x128xf32> to vector<16x128xf32>
    %5 = arith.addf %2, %4 : vector<16x128xf32>
    %cst_5 = arith.constant dense<0.000000e+00> : vector<16xf32>
    %6 = vector.multi_reduction <add>, %5, %cst_5 [1] : vector<16x128xf32> to vector<16xf32>
    %7 = vector.shape_cast %6 : vector<16xf32> to vector<16x1xf32>
    %cst_6 = arith.constant 3.125000e-02 : f32
    %8 = vector.broadcast %cst_6 : f32 to vector<16x1xf32>
    %9 = arith.mulf %7, %8 : vector<16x1xf32>
    %10 = arith.mulf %5, %5 : vector<16x128xf32>
    %cst_7 = arith.constant dense<0.000000e+00> : vector<16xf32>
    %11 = vector.multi_reduction <add>, %10, %cst_7 [1] : vector<16x128xf32> to vector<16xf32>
    %12 = vector.shape_cast %11 : vector<16xf32> to vector<16x1xf32>
    %cst_8 = arith.constant 3.125000e-02 : f32
    %13 = vector.broadcast %cst_8 : f32 to vector<16x1xf32>
    %14 = arith.mulf %12, %13 : vector<16x1xf32>
    %15 = arith.mulf %9, %9 : vector<16x1xf32>
    %16 = arith.subf %14, %15 : vector<16x1xf32>
    %cst_9 = arith.constant 0.000000e+00 : f32
    %17 = vector.broadcast %cst_9 : f32 to vector<16x1xf32>
    %18 = arith.maximumf %16, %17 : vector<16x1xf32>
    %19 = vector.broadcast %9 : vector<16x1xf32> to vector<16x128xf32>
    %20 = arith.subf %5, %19 : vector<16x128xf32>
    %cst_10 = arith.constant 9.99999974E-6 : f32
    %21 = vector.broadcast %cst_10 : f32 to vector<16x1xf32>
    %22 = arith.addf %18, %21 : vector<16x1xf32>
    %23 = math.rsqrt %22 : vector<16x1xf32>
    %24 = vector.broadcast %23 : vector<16x1xf32> to vector<16x128xf32>
    %25 = arith.mulf %20, %24 : vector<16x128xf32>
    %c1 = arith.constant 1 : index
    %c0_11 = arith.constant 0 : index
    %26 = vector.load %arg3[%c1, %c0_11] : memref<8x128xf32, #tpu.memory_space<vmem>>, vector<1x128xf32>
    %27 = vector.broadcast %26 : vector<1x128xf32> to vector<16x128xf32>
    %28 = arith.mulf %25, %27 : vector<16x128xf32>
    %c2 = arith.constant 2 : index
    %c0_12 = arith.constant 0 : index
    %29 = vector.load %arg3[%c2, %c0_12] : memref<8x128xf32, #tpu.memory_space<vmem>>, vector<1x128xf32>
    %30 = vector.broadcast %29 : vector<1x128xf32> to vector<16x128xf32>
    %31 = arith.addf %28, %30 : vector<16x128xf32>
    %32 = arith.truncf %31 : vector<16x128xf32> to vector<16x128xbf16>
    %c0_13 = arith.constant 0 : index
    %c0_14 = arith.constant 0 : index
    %33 = vector.load %arg4[%c0_13, %c0_14] : memref<16x128xbf16, #tpu.memory_space<vmem>>, vector<16x128xbf16>
    tpu.vector_store %arg4[%c0_13, %c0_14], %32 {strides = array<i32>} : memref<16x128xbf16, #tpu.memory_space<vmem>>, vector<16x128xbf16>,
    return
  }
  func.func @transform_0(%arg0: i32) -> (i32, i32) {
    %c0_i32 = arith.constant 0 : i32
    %c0_i32_0 = arith.constant 0 : i32
    return %arg0, %c0_i32 : i32, i32
  }
  func.func @transform_1(%arg0: i32) -> (i32, i32) {
    %c0_i32 = arith.constant 0 : i32
    %c0_i32_0 = arith.constant 0 : i32
    %c0_i32_1 = arith.constant 0 : i32
    return %c0_i32, %c0_i32_0 : i32, i32
  }
  func.func @transform_2(%arg0: i32) -> (i32, i32) {
    %c0_i32 = arith.constant 0 : i32
    %c0_i32_0 = arith.constant 0 : i32
    %c0_i32_1 = arith.constant 0 : i32
    return %c0_i32, %c0_i32_0 : i32, i32
  }
  func.func @transform_3(%arg0: i32) -> (i32, i32) {
    %c0_i32 = arith.constant 0 : i32
    %c0_i32_0 = arith.constant 0 : i32
    return %arg0, %c0_i32 : i32, i32
  }
}

</mosaic_0001>

<llo_original>
// kernel: tpu_custom_call.1
$region0: #{tpu_custom_call.1}
  #allocation0 [shape = 'u32[]', space=smem, size = 0x4, offset = 0x4, fixed_abs, tag = 'smem constant byte address 0x4 - core index']
  #allocation1 [shape = 'u32[144,128]{1,0:T(1,128)}', space=vmem, size = 0x12000, scoped, tag = 'internal scratch']
  %s0 = inlined_call_operand.hbm [shape: bf16[32,256], index: 0, kind: input, shape index: {}]
  %s1 = inlined_call_operand.hbm [shape: bf16[256,128], index: 1, kind: input, shape index: {}]
  %s2 = inlined_call_operand.hbm [shape: f32[8,128], index: 2, kind: input, shape index: {}]
  %s3 = inlined_call_operand.hbm [shape: bf16[32,128], index: 3, kind: output, shape index: {}]
  %s4 = sld [smem:[#allocation0]]
  $region57: #{tpu_custom_call.1} parent=0
    _
  %s6 = ssub.s32 1, %s4
  %s7 = scalar_select 0, %s6, %s4
  $region1: #{tpu_custom_call.1} parent=0
    #allocation2 [shape = 'u8[16384]{0}', space=vmem, size = 0x4000, scoped, tag = 'input window, operand 0']
    #allocation3 [shape = 's32[2]{0}', space=sflag, size = 0x8, scoped, tag = 'scoped memory for tpu_custom_call.1']
    #allocation4 [shape = 's32[2]{0}', space=sflag, size = 0x8, scoped, tag = 'scoped memory for tpu_custom_call.1']
    #allocation5 [shape = 'u8[65536]{0}', space=vmem, size = 0x10000, scoped, tag = 'input window, operand 1, single buffered']
    #allocation6 [shape = 's32[1]{0}', space=sflag, size = 0x4, scoped, tag = 'scoped memory for tpu_custom_call.1']
    #allocation7 [shape = 'u8[4096]{0}', space=vmem, size = 0x1000, scoped, tag = 'input window, operand 2, single buffered']
    #allocation8 [shape = 'u8[8192]{0}', space=vmem, size = 0x2000, scoped, tag = 'output window, operand 0']
    %8 = vsyncpa [#allocation3], 0
    %s9 = scalar_lea.sflag [#allocation3], 1
    %10 = vsyncpa %s9, 0
    %11 = vsyncpa [#allocation6], 0
    %12 = vsyncpa [#allocation4], 0
    %s13 = scalar_lea.sflag [#allocation4], 1
    %14 = vsyncpa %s13, 0
    loop: start=0, step=1, limit=4
    $region2: #{tpu_custom_call.1} parent=1 // loop_pre_header
      _
    $region3: #{tpu_custom_call.1} parent=1 // loop_header
      %s16 = sphi 0, %s20
      %p17 = scmp.ge.s32.totalorder %s16, 4
      %s26 = sphi 0, %s28
      %s29 = sphi 0, %s26
      %s30 = sphi 0, %s29
      %s46 = sphi 0, %s30
      %s50 = sphi 0, %s50
      %s52 = sphi 0, %s50
      %s53 = sphi 0, %s52
      %s67 = sphi 0, %s53
      %s71 = sphi 0, %s71
      %s73 = sphi 0, %s71
      %s74 = sphi 0, %s73
      %s88 = sphi 0, %s74
      %s94 = sphi 0, %s96
      %s97 = sphi 0, %s94
      %s98 = sphi 0, %s97
      %s114 = sphi 0, %s98
    $region4: #{tpu_custom_call.1} parent=1 // loop_header_branch
      %19 = sbr.rel (%p17) target = $region8
    $region5: #{tpu_custom_call.1} parent=1 // loop_body
      %s21 = ssub.s32 %s16, 1
      %s22 = ssub.s32 %s16, 2
      %s23 = sadd.s32 %s16, 1
      %s24 = ssub.s32 %s16, %s23
      %p25 = scmp.eq.s32.totalorder %s24, 0
      %s27 = sadd.s32 %s26, 1
      %s28 = scalar_select %p25, %s26, %s27
      %p31 = pneg %p25
      %p32 = scmp.eq.s32.totalorder %s16, 1
      %p33 = por %p31, %p32
      %p34 = scmp.ne.s32.totalorder %s26, %s29
      %p35 = scmp.eq.s32.totalorder %s16, 0
      %p36 = por %p34, %p35
      %p37 = scmp.ne.s32.totalorder %s26, %s29
      %p38 = scmp.eq.s32.totalorder %s21, 1
      %p39 = por %p37, %p38
      %p40 = scmp.ne.s32.totalorder %s29, %s30
      %p41 = scmp.eq.s32.totalorder %s21, 0
      %p42 = por %p40, %p41
      %p43 = scmp.ne.s32.totalorder %s29, %s30
      %p44 = scmp.eq.s32.totalorder %s22, 1
      %p45 = por %p43, %p44
      %p47 = scmp.ne.s32.totalorder %s30, %s46
      %p48 = scmp.eq.s32.totalorder %s22, 0
      %p49 = por %p47, %p48
      %s51 = sadd.s32 %s50, 1
      %p54 = scmp.eq.s32.totalorder %s16, 1
      %p55 = scmp.ne.s32.totalorder %s50, %s52
      %p56 = scmp.eq.s32.totalorder %s16, 0
      %p57 = por %p55, %p56
      %p58 = scmp.ne.s32.totalorder %s50, %s52
      %p59 = scmp.eq.s32.totalorder %s21, 1
      %p60 = por %p58, %p59
      %p61 = scmp.ne.s32.totalorder %s52, %s53
      %p62 = scmp.eq.s32.totalorder %s21, 0
      %p63 = por %p61, %p62
      %p64 = scmp.ne.s32.totalorder %s52, %s53
      %p65 = scmp.eq.s32.totalorder %s22, 1
      %p66 = por %p64, %p65
      %p68 = scmp.ne.s32.totalorder %s53, %s67
      %p69 = scmp.eq.s32.totalorder %s22, 0
      %p70 = por %p68, %p69
      %s72 = sadd.s32 %s71, 1
      %p75 = scmp.eq.s32.totalorder %s16, 1
      %p76 = scmp.ne.s32.totalorder %s71, %s73
      %p77 = scmp.eq.s32.totalorder %s16, 0
      %p78 = por %p76, %p77
      %p79 = scmp.ne.s32.totalorder %s71, %s73
      %p80 = scmp.eq.s32.totalorder %s21, 1
      %p81 = por %p79, %p80
      %p82 = scmp.ne.s32.totalorder %s73, %s74
      %p83 = scmp.eq.s32.totalorder %s21, 0
      %p84 = por %p82, %p83
      %p85 = scmp.ne.s32.totalorder %s73, %s74
      %p86 = scmp.eq.s32.totalorder %s22, 1
      %p87 = por %p85, %p86
      %p89 = scmp.ne.s32.totalorder %s74, %s88
      %p90 = scmp.eq.s32.totalorder %s22, 0
      %p91 = por %p89, %p90
      %s92 = ssub.s32 %s16, %s23
      %p93 = scmp.eq.s32.totalorder %s92, 0
      %s95 = sadd.s32 %s94, 1
      %s96 = scalar_select %p93, %s94, %s95
      %p99 = pneg %p93
      %p100 = scmp.eq.s32.totalorder %s16, 1
      %p101 = por %p99, %p100
      %p102 = scmp.ne.s32.totalorder %s94, %s97
      %p103 = scmp.eq.s32.totalorder %s16, 0
      %p104 = por %p102, %p103
      %p105 = scmp.ne.s32.totalorder %s94, %s97
      %p106 = scmp.eq.s32.totalorder %s21, 1
      %p107 = por %p105, %p106
      %p108 = scmp.ne.s32.totalorder %s97, %s98
      %p109 = scmp.eq.s32.totalorder %s21, 0
      %p110 = por %p108, %p109
      %p111 = scmp.ne.s32.totalorder %s97, %s98
      %p112 = scmp.eq.s32.totalorder %s22, 1
      %p113 = por %p111, %p112
      %p115 = scmp.ne.s32.totalorder %s98, %s114
      %p116 = scmp.eq.s32.totalorder %s22, 0
      %p117 = por %p115, %p116
      %p118 = scmp.le.s32.totalorder 1, %s16
      %p119 = scmp.lt.s32.totalorder %s16, 3
      %p120 = pnand %p118, %p119
      %p121 = pneg %p120
      // Predicated region
      $region9: #{tpu_custom_call.1} parent=5 // pred_check
        _
      $region10: #{tpu_custom_call.1} parent=5 // pred_check_branch
        %123 = sbr.rel (%p120) target = $region12
      $region11: #{tpu_custom_call.1} parent=5 // pred_region
        %s124 = ssub.s32 %s16, 1
        // Predicated region
        $region13: #{tpu_custom_call.1} parent=11 // pred_check
          %p125 = pneg %p63
        $region14: #{tpu_custom_call.1} parent=11 // pred_check_branch
          %127 = sbr.rel (%p125) target = $region16
        $region15: #{tpu_custom_call.1} parent=11 // pred_region
          %s129 = ssub.s32 2048, 2048
          %130 = vsyncadd [#allocation6], %s129
          %s131 = sshll.u32 [#allocation5], 4
          %s132 = int_to_ptr.vmem [resolvable:$true] %s131
          %137 = dma.hbm_to_vmem [thread:$0]  %s1, 2048, %s132, [#allocation6], 64, 64, 4
        $region16: #{tpu_custom_call.1} parent=11 // pred_fallthru
          _
        // Predicated region
        $region17: #{tpu_custom_call.1} parent=11 // pred_check
          %p138 = pneg %p84
        $region18: #{tpu_custom_call.1} parent=11 // pred_check_branch
          %140 = sbr.rel (%p138) target = $region20
        $region19: #{tpu_custom_call.1} parent=11 // pred_region
          %s142 = ssub.s32 128, 128
          %143 = vsyncadd [#allocation6], %s142
          %s145 = sshll.u32 [#allocation7], 4
          %s146 = int_to_ptr.vmem [resolvable:$true] %s145
          %148 = dma.hbm_to_vmem [thread:$0]  %s2, 128, %s146, [#allocation6]
        $region20: #{tpu_custom_call.1} parent=11 // pred_fallthru
          _
      $region12: #{tpu_custom_call.1} parent=5 // pred_fallthru
        _
      %p149 = scmp.lt.s32.totalorder %s16, 2
      // Predicated region
      $region21: #{tpu_custom_call.1} parent=5 // pred_check
        %p150 = pneg %p149
      $region22: #{tpu_custom_call.1} parent=5 // pred_check_branch
        %152 = sbr.rel (%p150) target = $region24
      $region23: #{tpu_custom_call.1} parent=5 // pred_region
        // Predicated region
        $region25: #{tpu_custom_call.1} parent=23 // pred_check
          %p153 = pneg %p36
        $region26: #{tpu_custom_call.1} parent=23 // pred_check_branch
          %155 = sbr.rel (%p153) target = $region28
        $region27: #{tpu_custom_call.1} parent=23 // pred_region
          %s156 = sand.u32 %s26, 1
          %s157 = scalar_lea.sflag [#allocation3], %s156
          %s158 = sand.u32 %s26, 1
          %s159 = smul.addr %s158, 16
          %s160 = scalar_lea.vmem [#allocation2], %s159
          %s161 = smul.u32 2, %s16
          %s163 = ssub.s32 256, 256
          %164 = vsyncadd %s157, %s163
          %s165 = smul.addr %s161, 2
          %s166 = smul.addr %s165, 64
          %s167 = scalar_lea.hbm %s0, %s166
          %s168 = sshll.u32 %s160, 4
          %s169 = int_to_ptr.vmem [resolvable:$true] %s168
          %174 = dma.hbm_to_vmem [thread:$0]  %s167, 256, %s169, %s157, 128, 128, 8
        $region28: #{tpu_custom_call.1} parent=23 // pred_fallthru
          _
      $region24: #{tpu_custom_call.1} parent=5 // pred_fallthru
        _
      %p175 = scmp.le.s32.totalorder 1, %s16
      %p176 = scmp.lt.s32.totalorder %s16, 3
      %p177 = pnand %p175, %p176
      %p178 = pneg %p177
      // Predicated region
      $region29: #{tpu_custom_call.1} parent=5 // pred_check
        _
      $region30: #{tpu_custom_call.1} parent=5 // pred_check_branch
        %180 = sbr.rel (%p177) target = $region32
      $region31: #{tpu_custom_call.1} parent=5 // pred_region
        %s181 = ssub.s32 %s16, 1
        %s182 = sand.u32 %s29, 1
        %s183 = scalar_lea.sflag [#allocation3], %s182
        %s184 = sand.u32 %s29, 1
        %s185 = smul.addr %s184, 16
        %s186 = scalar_lea.vmem [#allocation2], %s185
        // Predicated region
        $region33: #{tpu_custom_call.1} parent=31 // pred_check
          %p187 = pneg %p42
        $region34: #{tpu_custom_call.1} parent=31 // pred_check_branch
          %189 = sbr.rel (%p187) target = $region36
        $region35: #{tpu_custom_call.1} parent=31 // pred_region
          %190 = dma.done %s183, 256
        $region36: #{tpu_custom_call.1} parent=31 // pred_fallthru
          _
        // Predicated region
        $region37: #{tpu_custom_call.1} parent=31 // pred_check
          %p191 = pneg %p63
        $region38: #{tpu_custom_call.1} parent=31 // pred_check_branch
          %193 = sbr.rel (%p191) target = $region40
        $region39: #{tpu_custom_call.1} parent=31 // pred_region
          %194 = dma.done [#allocation6], 2048
        $region40: #{tpu_custom_call.1} parent=31 // pred_fallthru
          _
        // Predicated region
        $region41: #{tpu_custom_call.1} parent=31 // pred_check
          %p195 = pneg %p84
        $region42: #{tpu_custom_call.1} parent=31 // pred_check_branch
          %197 = sbr.rel (%p195) target = $region44
        $region43: #{tpu_custom_call.1} parent=31 // pred_region
          %198 = dma.done [#allocation6], 128
        $region44: #{tpu_custom_call.1} parent=31 // pred_fallthru
          _
        %s199 = sand.u32 %s29, 1
        %s200 = scalar_lea.sflag [#allocation3], %s199
        %s201 = sand.u32 %s29, 1
        %s202 = smul.addr %s201, 16
        %s203 = scalar_lea.vmem [#allocation2], %s202
        %p204 = pneg %p42
        %p205 = pneg %p39
        %p206 = pneg %p63
        %p207 = pneg %p60
        %p208 = pneg %p84
        %p209 = pneg %p81
        %p210 = pneg %p110
        %p211 = pneg %p107
        %s212 = sand.u32 %s97, 1
        %s213 = scalar_lea.sflag [#allocation4], %s212
        %s214 = sand.u32 %s97, 1
        %s215 = smul.addr %s214, 8
        %s216 = scalar_lea.vmem [#allocation8], %s215
        %s217 = smul.u32 2, %s21
        %s218 = smul.u32 2, %s21
        %v220 = vld [vmem:[%s186] sm:$0xff]
        %v221 = vld [vmem:[%s186 + $0x8] sm:$0xff]
        %v222 = vld [vmem:[#allocation5] sm:$0xf]
        %v223 = vld [vmem:[#allocation5 + $0x4] sm:$0xf]
        %v224 = vld [vmem:[#allocation5 + $0x8] sm:$0xf]
        %v225 = vld [vmem:[#allocation5 + $0xc] sm:$0xf]
        %v226 = vld [vmem:[#allocation5 + $0x10] sm:$0xf]
        %v227 = vld [vmem:[#allocation5 + $0x14] sm:$0xf]
        %v228 = vld [vmem:[#allocation5 + $0x18] sm:$0xf]
        %v229 = vld [vmem:[#allocation5 + $0x1c] sm:$0xf]
        %v230 = vld [vmem:[#allocation5 + $0x20] sm:$0xf]
        %v231 = vld [vmem:[#allocation5 + $0x24] sm:$0xf]
        %v232 = vld [vmem:[#allocation5 + $0x28] sm:$0xf]
        %v233 = vld [vmem:[#allocation5 + $0x2c] sm:$0xf]
        %v234 = vld [vmem:[#allocation5 + $0x30] sm:$0xf]
        %v235 = vld [vmem:[#allocation5 + $0x34] sm:$0xf]
        %v236 = vld [vmem:[#allocation5 + $0x38] sm:$0xf]
        %v237 = vld [vmem:[#allocation5 + $0x3c] sm:$0xf]
        %v238 = vld [vmem:[#allocation5 + $0x40] sm:$0xf]
        %v239 = vld [vmem:[#allocation5 + $0x44] sm:$0xf]
        %v240 = vld [vmem:[#allocation5 + $0x48] sm:$0xf]
        %v241 = vld [vmem:[#allocation5 + $0x4c] sm:$0xf]
        %v242 = vld [vmem:[#allocation5 + $0x50] sm:$0xf]
        %v243 = vld [vmem:[#allocation5 + $0x54] sm:$0xf]
        %v244 = vld [vmem:[#allocation5 + $0x58] sm:$0xf]
        %v245 = vld [vmem:[#allocation5 + $0x5c] sm:$0xf]
        %v246 = vld [vmem:[#allocation5 + $0x60] sm:$0xf]
        %v247 = vld [vmem:[#allocation5 + $0x64] sm:$0xf]
        %v248 = vld [vmem:[#allocation5 + $0x68] sm:$0xf]
        %v249 = vld [vmem:[#allocation5 + $0x6c] sm:$0xf]
        %v250 = vld [vmem:[#allocation5 + $0x70] sm:$0xf]
        %v251 = vld [vmem:[#allocation5 + $0x74] sm:$0xf]
        %v252 = vld [vmem:[#allocation5 + $0x78] sm:$0xf]
        %v253 = vld [vmem:[#allocation5 + $0x7c] sm:$0xf]
        %v254 = vld [vmem:[#allocation7] sm:$0x1]
        %v255 = vlaneseq
        %v256 = vshrl.u32 %v255, 7
        %v257 = vsub.s32 0, %v256
        %v258 = vrot.slane %v254, %v257
        %v261 = vunpack.c.l.b16 %v220
        %v262 = vunpack.c.h.b16 %v220
        %v263 = vunpack.c.l.b16 %v221
        %v264 = vunpack.c.h.b16 %v221
        %v265 = vpack.c.b16 %v263, %v261
        %v266 = vpack.c.b16 %v264, %v262
        %v301 = vunpack.c.l.b16 %v222
        %v302 = vunpack.c.l.b16 %v223
        %v303 = vunpack.c.l.b16 %v224
        %v304 = vunpack.c.l.b16 %v225
        %v305 = vunpack.c.l.b16 %v226
        %v306 = vunpack.c.l.b16 %v227
        %v307 = vunpack.c.l.b16 %v228
        %v308 = vunpack.c.l.b16 %v229
        %v309 = vunpack.c.l.b16 %v230
        %v310 = vunpack.c.l.b16 %v231
        %v311 = vunpack.c.l.b16 %v232
        %v312 = vunpack.c.l.b16 %v233
        %v313 = vunpack.c.l.b16 %v234
        %v314 = vunpack.c.l.b16 %v235
        %v315 = vunpack.c.l.b16 %v236
        %v316 = vunpack.c.l.b16 %v237
        %v317 = vunpack.c.l.b16 %v238
        %v318 = vunpack.c.l.b16 %v239
        %v319 = vunpack.c.l.b16 %v240
        %v320 = vunpack.c.l.b16 %v241
        %v321 = vunpack.c.l.b16 %v242
        %v322 = vunpack.c.l.b16 %v243
        %v323 = vunpack.c.l.b16 %v244
        %v324 = vunpack.c.l.b16 %v245
        %v325 = vunpack.c.l.b16 %v246
        %v326 = vunpack.c.l.b16 %v247
        %v327 = vunpack.c.l.b16 %v248
        %v328 = vunpack.c.l.b16 %v249
        %v329 = vunpack.c.l.b16 %v250
        %v330 = vunpack.c.l.b16 %v251
        %v331 = vunpack.c.l.b16 %v252
        %v332 = vunpack.c.l.b16 %v253
        %v333 = vpack.c.b16 %v302, %v301
        %v334 = vpack.c.b16 %v304, %v303
        %v335 = vpack.c.b16 %v306, %v305
        %v336 = vpack.c.b16 %v308, %v307
        %v337 = vpack.c.b16 %v310, %v309
        %v338 = vpack.c.b16 %v312, %v311
        %v339 = vpack.c.b16 %v314, %v313
        %v340 = vpack.c.b16 %v316, %v315
        %v341 = vpack.c.b16 %v318, %v317
        %v342 = vpack.c.b16 %v320, %v319
        %v343 = vpack.c.b16 %v322, %v321
        %v344 = vpack.c.b16 %v324, %v323
        %v345 = vpack.c.b16 %v326, %v325
        %v346 = vpack.c.b16 %v328, %v327
        %v347 = vpack.c.b16 %v330, %v329
        %v348 = vpack.c.b16 %v332, %v331
        %365 = vmatprep.subr.bf16.mxu0 0
        %366 = vmatpush1.bf16.msra.mxu0 %v333
        %367 = vmatprep.subr.bf16.mxu0 0
        %368 = vmatpush1.bf16.msra.mxu0 %v334
        %369 = vmatprep.subr.bf16.mxu0 0
        %370 = vmatpush1.bf16.msra.mxu0 %v335
        %371 = vmatprep.subr.bf16.mxu0 0
        %372 = vmatpush1.bf16.msra.mxu0 %v336
        %373 = vmatprep.subr.bf16.mxu0 0
        %374 = vmatpush1.bf16.msra.mxu0 %v337
        %375 = vmatprep.subr.bf16.mxu0 0
        %376 = vmatpush1.bf16.msra.mxu0 %v338
        %377 = vmatprep.subr.bf16.mxu0 0
        %378 = vmatpush1.bf16.msra.mxu0 %v339
        %379 = vmatprep.subr.bf16.mxu0 0
        %380 = vmatpush1.bf16.msra.mxu0 %v340
        %381 = vmatprep.subr.bf16.mxu0 0
        %382 = vmatpush1.bf16.msra.mxu0 %v341
        %383 = vmatprep.subr.bf16.mxu0 0
        %384 = vmatpush1.bf16.msra.mxu0 %v342
        %385 = vmatprep.subr.bf16.mxu0 0
        %386 = vmatpush1.bf16.msra.mxu0 %v343
        %387 = vmatprep.subr.bf16.mxu0 0
        %388 = vmatpush1.bf16.msra.mxu0 %v344
        %389 = vmatprep.subr.bf16.mxu0 0
        %390 = vmatpush1.bf16.msra.mxu0 %v345
        %391 = vmatprep.subr.bf16.mxu0 0
        %392 = vmatpush1.bf16.msra.mxu0 %v346
        %393 = vmatprep.subr.bf16.mxu0 0
        %394 = vmatpush1.bf16.msra.mxu0 %v347
        %395 = vmatprep.subr.bf16.mxu0 0
        %396 = vmatpush1.bf16.msra.mxu0 %v348
        %397 = vmatprep.mubr.bf16.mxu0 %v266
        %398 = vmatmul.mubr.bf16.gmra.mrb[0].mxu0 %v265
        %v399 = vpop.f32.mrb[0].mxu0
        %v400 = vadd.f32 %v258, %v399
        %v401 = vpop.f32.mrb[0].mxu0
        %v402 = vpop.f32.mrb[0].mxu0
        %v403 = vadd.f32 %v258, %v402
        %v404 = vpop.f32.mrb[0].mxu0
        %405 = vdwg.mxu0
        %406 = vadd.xlane.f32.xlu0 %v400
        %v407 = vpop.xlane.xlu0 %406
        %408 = vadd.xlane.f32.xlu0 %v403
        %v409 = vpop.xlane.xlu0 %408
        %v410 = vmul.f32 %v407, 0.03125
        %v411 = vmul.f32 %v409, 0.03125
        %v412 = vmul.f32 %v400, %v400
        %v413 = vmul.f32 %v403, %v403
        %414 = vadd.xlane.f32.xlu0 %v412
        %v415 = vpop.xlane.xlu0 %414
        %416 = vadd.xlane.f32.xlu0 %v413
        %v417 = vpop.xlane.xlu0 %416
        %v418 = vmul.f32 %v415, 0.03125
        %v419 = vmul.f32 %v417, 0.03125
        %v420 = vmul.f32 %v410, %v410
        %v421 = vmul.f32 %v411, %v411
        %v422 = vsub.f32 %v418, %v420
        %v423 = vsub.f32 %v419, %v421
        %v424 = vmax.f32 %v422, 0.0
        %v425 = vmax.f32 %v423, 0.0
        %v426 = vsub.f32 %v400, %v410
        %v427 = vsub.f32 %v403, %v411
        %v428 = vadd.f32 %v424, 1e-05
        %v429 = vadd.f32 %v425, 1e-05
        %v430 = vrsqrt.pop %v428
        %v431 = vrsqrt.pop %v429
        %v432 = vmul.f32 %v426, %v430
        %v433 = vmul.f32 %v427, %v431
        %v434 = vld [vmem:[#allocation7 + $0x1] sm:$0x1]
        %v435 = vlaneseq
        %v436 = vshrl.u32 %v435, 7
        %v437 = vsub.s32 0, %v436
        %v438 = vrot.slane %v434, %v437
        %v439 = vmul.f32 %v432, %v438
        %v440 = vmul.f32 %v433, %v438
        %v441 = vld [vmem:[#allocation7 + $0x2] sm:$0x1]
        %v442 = vlaneseq
        %v443 = vshrl.u32 %v442, 7
        %v444 = vsub.s32 0, %v443
        %v445 = vrot.slane %v441, %v444
        %v446 = vadd.f32 %v439, %v445
        %v447 = vadd.f32 %v440, %v445
        %v448 = vpack.c.bf16 %v447, %v446
        %v450 = vunpack.c.l.b16 %v448
        %v451 = vunpack.c.h.b16 %v448
        %v452 = vpack.c.b16 %v450, %v450
        %v453 = vpack.c.b16 %v451, %v451
        %456 = vst [vmem:[%s216] sm:$0xf] %v452
        %457 = vst [vmem:[%s216 + $0x4] sm:$0xf] %v453
        %s458 = sand.u32 %s97, 1
        %s459 = scalar_lea.sflag [#allocation4], %s458
        %s460 = sand.u32 %s97, 1
        %s461 = smul.addr %s460, 8
        %s462 = scalar_lea.vmem [#allocation8], %s461
        // Predicated region
        $region45: #{tpu_custom_call.1} parent=31 // pred_check
          %p463 = pneg %p107
        $region46: #{tpu_custom_call.1} parent=31 // pred_check_branch
          %465 = sbr.rel (%p463) target = $region48
        $region47: #{tpu_custom_call.1} parent=31 // pred_region
          %s466 = smul.u32 2, %s21
          %s468 = ssub.s32 128, 128
          %469 = vsyncadd %s459, %s468
          %s470 = smul.addr %s466, 64
          %s471 = scalar_lea.hbm %s3, %s470
          %s472 = sshll.u32 %s462, 4
          %s473 = int_to_ptr.vmem [resolvable:$true] %s472
          %478 = dma.vmem_to_hbm [thread:$0]  %s473, 128, %s471, %s459, 64, 64, 4
        $region48: #{tpu_custom_call.1} parent=31 // pred_fallthru
          _
      $region32: #{tpu_custom_call.1} parent=5 // pred_fallthru
        _
      %p479 = scmp.le.s32.totalorder 2, %s16
      // Predicated region
      $region49: #{tpu_custom_call.1} parent=5 // pred_check
        %p480 = pneg %p479
      $region50: #{tpu_custom_call.1} parent=5 // pred_check_branch
        %482 = sbr.rel (%p480) target = $region52
      $region51: #{tpu_custom_call.1} parent=5 // pred_region
        %s483 = ssub.s32 %s16, 2
        // Predicated region
        $region53: #{tpu_custom_call.1} parent=51 // pred_check
          %p484 = pneg %p113
        $region54: #{tpu_custom_call.1} parent=51 // pred_check_branch
          %486 = sbr.rel (%p484) target = $region56
        $region55: #{tpu_custom_call.1} parent=51 // pred_region
          %s487 = sand.u32 %s98, 1
          %s488 = scalar_lea.sflag [#allocation4], %s487
          %s489 = sand.u32 %s98, 1
          %s490 = smul.addr %s489, 8
          %s491 = scalar_lea.vmem [#allocation8], %s490
          %492 = dma.done %s488, 128
        $region56: #{tpu_custom_call.1} parent=51 // pred_fallthru
          _
      $region52: #{tpu_custom_call.1} parent=5 // pred_fallthru
        _
    $region6: #{tpu_custom_call.1} parent=1 // loop_footer
      %s20 = sadd.s32 1, %s16
    $region7: #{tpu_custom_call.1} parent=1 // loop_footer_branch
      %15 = sbr.rel target = $region3
    $region8: #{tpu_custom_call.1} parent=1 // loop_exit
      _
    %493 = vsyncpa [#allocation3], 1
    %s494 = scalar_lea.sflag [#allocation3], 1
    %495 = vsyncpa %s494, 1
    %496 = vsyncpa [#allocation6], 1
    %497 = vsyncpa [#allocation4], 1
    %s498 = scalar_lea.sflag [#allocation4], 1
    %499 = vsyncpa %s498, 1

</llo_original>
